<compile_context>
chip_gen: v7x
topology: tpu7x:2x2x1
jax: 0.10.0
libtpu: 0.0.40
codegen_flags: <defaults>
</compile_context>

<pallas_src>
import functools

import jax
import jax.numpy as jnp
import numpy as np
from jax import lax
from jax.experimental import pallas as pl
from jax.experimental.pallas import tpu as pltpu


# ---------------------------------------------------------------------------
# Kernel
# ---------------------------------------------------------------------------
def _tcn_kernel(x_ref, *refs, num_levels, has_down):
    out_ref = refs[-1]
    param_refs = refs[:-1]

    x = x_ref[...]                      # (tile_m, T*F)   compute_dtype
    h = x
    for lvl in range(num_levels):
        w = param_refs[2 * lvl][...]        # (T*C_in, T*C_out) banded, compute_dtype
        b = param_refs[2 * lvl + 1][...]    # (1, T*C_out)      float32
        z = jnp.dot(h, w, preferred_element_type=jnp.float32) + b
        h = jnp.maximum(z, 0.0).astype(x.dtype)

    if has_down:
        wd = param_refs[2 * num_levels][...]      # (T*F, T*C_last) block-diag
        bd = param_refs[2 * num_levels + 1][...]  # (1, T*C_last)   float32
        down = jnp.dot(x, wd, preferred_element_type=jnp.float32) + bd
        out_ref[...] = jnp.maximum(h.astype(jnp.float32) + down,
                                   0.0).astype(out_ref.dtype)
    else:
        # Faithful to the PyTorch forward's operator precedence: when
        # downsample is None the whole network output is discarded -> relu(x).
        out_ref[...] = jnp.maximum(x.astype(jnp.float32), 0.0).astype(out_ref.dtype)


# ---------------------------------------------------------------------------
# Wrapper-side weight plumbing
# ---------------------------------------------------------------------------
def _banded_conv_weight(w, T, dilation):
    """(K, C_in, C_out) causal dilated conv -> (T*C_in, T*C_out) banded matmul."""
    K, C_in, C_out = w.shape
    mask = np.zeros((K, T, T), np.float32)
    for k in range(K):
        shift = (K - 1 - k) * dilation       # left (causal) shift for this tap
        for t in range(shift, T):
            mask[k, t - shift, t] = 1.0
    W = jnp.einsum('kst,kio->sito', jnp.asarray(mask), w)   # (T, C_in, T, C_out)
    return W.reshape(T * C_in, T * C_out)


def _blockdiag_1x1_weight(wd, T):
    """(F, C_out) 1x1 conv -> (T*F, T*C_out) block-diagonal matmul."""
    F_in, C_out = wd.shape
    W = jnp.einsum('st,io->sito', jnp.eye(T, dtype=wd.dtype), wd)
    return W.reshape(T * F_in, T * C_out)


def _pick_tile_m(M, requested):
    """Largest divisor of M that is <= requested and (if possible) keeps grid >= 2."""
    cap = max(M // 2, 1)
    t = max(1, min(requested, cap))
    while M % t:
        t -= 1
    return t


# ---------------------------------------------------------------------------
# Public entry point
# ---------------------------------------------------------------------------
def temporal_conv_net(x, params, *, num_channels, kernel_size=2, tile_m=2048,
                      compute_dtype=jnp.float32):
    """x: (B, N, T, F) float32 -> (B, N, T, num_channels[-1]) float32."""
    B, N, T, F = x.shape
    num_levels = len(num_channels)
    c_last = num_channels[-1]
    has_down = F != c_last

    M = B * N
    tile_m = _pick_tile_m(M, tile_m)
    grid = (M // tile_m,)

    # Lane-dense 2-D layouts.
    x2 = x.reshape(M, T * F).astype(compute_dtype)

    flat_params = []
    in_ch = F
    for lvl in range(num_levels):
        d = 2 ** lvl
        w_b = _banded_conv_weight(params[f"w{lvl}"], T, d).astype(compute_dtype)
        b_t = jnp.tile(params[f"b{lvl}"], (1, T)).astype(jnp.float32)  # (1, T*C_out)
        flat_params += [w_b, b_t]
        in_ch = num_channels[lvl]
    if has_down:
        wd_b = _blockdiag_1x1_weight(params["w_down"], T).astype(compute_dtype)
        bd_t = jnp.tile(params["b_down"], (1, T)).astype(jnp.float32)
        flat_params += [wd_b, bd_t]

    out_lanes = T * c_last if has_down else T * F

    in_specs = [pl.BlockSpec((tile_m, T * F), lambda i: (i, 0))]
    for p in flat_params:
        in_specs.append(pl.BlockSpec(p.shape, lambda i: (0, 0)))

    kernel = functools.partial(_tcn_kernel, num_levels=num_levels,
                               has_down=has_down)

    out = pl.pallas_call(
        kernel,
        out_shape=jax.ShapeDtypeStruct((M, out_lanes), jnp.float32),
        grid=grid,
        in_specs=in_specs,
        out_specs=pl.BlockSpec((tile_m, out_lanes), lambda i: (i, 0)),
        compiler_params=pltpu.CompilerParams(
            dimension_semantics=("parallel",),
            vmem_limit_bytes=48 * 1024 * 1024),
    )(x2, *flat_params)

    return out.reshape(B, N, T, c_last)


# ---------------------------------------------------------------------------
# Parameter init (matches PyTorch module: weight ~ N(0, 0.01), Conv2d bias
# default U(-1/sqrt(fan_in), 1/sqrt(fan_in))).
# ---------------------------------------------------------------------------
def init_params(key, num_inputs, num_channels, kernel_size=2):
    params = {}
    in_ch = num_inputs
    keys = jax.random.split(key, 2 * len(num_channels) + 2)
    for i, out_ch in enumerate(num_channels):
        kw, kb = keys[2 * i], keys[2 * i + 1]
        # PyTorch stores conv weight as (C_out, C_in, 1, K); we keep (K, C_in, C_out).
        params[f"w{i}"] = 0.01 * jax.random.normal(
            kw, (kernel_size, in_ch, out_ch), jnp.float32)
        bound = 1.0 / np.sqrt(in_ch * 1 * kernel_size)
        params[f"b{i}"] = jax.random.uniform(
            kb, (1, out_ch), jnp.float32, -bound, bound)
        in_ch = out_ch
    if num_inputs != num_channels[-1]:
        kw, kb = keys[-2], keys[-1]
        params["w_down"] = 0.01 * jax.random.normal(
            kw, (num_inputs, num_channels[-1]), jnp.float32)
        bound = 1.0 / np.sqrt(num_inputs)
        params["b_down"] = jax.random.uniform(
            kb, (1, num_channels[-1]), jnp.float32, -bound, bound)
    return params


# ---------------------------------------------------------------------------
# Pure-JAX reference mirroring the PyTorch forward (dropout = identity)
# ---------------------------------------------------------------------------
def reference(x, params, num_channels, kernel_size=2):
    B, N, T, F = x.shape
    y = jnp.transpose(x, (0, 3, 1, 2))  # (B, F, N, T)  == x.permute(0,3,1,2)
    h = y
    for i, _ in enumerate(num_channels):
        d = 2 ** i
        P = (kernel_size - 1) * d
        w = jnp.transpose(params[f"w{i}"], (2, 1, 0))[:, :, None, :]  # OIHW
        b = params[f"b{i}"][0]
        h = lax.conv_general_dilated(
            h, w, window_strides=(1, 1), padding=((0, 0), (P, P)),
            rhs_dilation=(1, d),
            dimension_numbers=("NCHW", "OIHW", "NCHW"),
            precision=lax.Precision.HIGHEST)
        h = h + b[None, :, None, None]
        h = h[:, :, :, :T]                 # Chomp1d
        h = jnp.maximum(h, 0.0)            # ReLU (dropout = identity)
    if F != num_channels[-1]:
        wd = jnp.transpose(params["w_down"], (1, 0))[:, :, None, None]
        bd = params["b_down"][0]
        down = lax.conv_general_dilated(
            y, wd, (1, 1), ((0, 0), (0, 0)),
            dimension_numbers=("NCHW", "OIHW", "NCHW"),
            precision=lax.Precision.HIGHEST)
        down = down + bd[None, :, None, None]
        out = jnp.maximum(h + down, 0.0)
    else:
        out = jnp.maximum(y, 0.0)
    return jnp.transpose(out, (0, 2, 3, 1))  # (B, N, T, C_out)


if __name__ == "__main__":
    key = jax.random.PRNGKey(0)
    B, N, T, F = 2, 128, 8, 4         # (batch, nodes, time, features)
    num_channels = [8, 16]            # last entry != F -> downsample path used
    kx, kp = jax.random.split(key)
    x = jax.random.normal(kx, (B, N, T, F), jnp.float32)
    params = init_params(kp, F, num_channels)

    out = temporal_conv_net(x, params, num_channels=num_channels)
    out = jax.block_until_ready(out)
    assert out.shape == (B, N, T, num_channels[-1])

    ref = reference(x, params, num_channels)
    # Kernel uses default MXU precision (single bf16 pass, f32 accumulation)
    # per the perf review, so tolerances are relaxed vs the HIGHEST-precision
    # reference.
    np.testing.assert_allclose(np.asarray(out), np.asarray(ref),
                               atol=1e-2, rtol=1e-2)
    print("KERNEL_OK")
</pallas_src>

<mosaic_0001>
module attributes {stable_mosaic.version = 11 : i64} {
  func.func @_tcn_kernel(%arg0: i32, %arg1: memref<128x32xf32, #tpu.memory_space<vmem>>, %arg2: memref<32x64xf32, #tpu.memory_space<vmem>>, %arg3: memref<1x64xf32, #tpu.memory_space<vmem>>, %arg4: memref<64x128xf32, #tpu.memory_space<vmem>>, %arg5: memref<1x128xf32, #tpu.memory_space<vmem>>, %arg6: memref<32x128xf32, #tpu.memory_space<vmem>>, %arg7: memref<1x128xf32, #tpu.memory_space<vmem>>, %arg8: memref<128x128xf32, #tpu.memory_space<vmem>>) attributes {dimension_semantics = [#tpu.dimension_semantics<parallel>], iteration_bounds = array<i64: 2>, scalar_prefetch = 0 : i64, scratch_operands = 0 : i64, tpu.core_type = #tpu.core_type<tc>, window_params = [{transform_indices = @transform_0, window_bounds = array<i64: 128, 32>}, {pipeline_mode = #tpu.pipeline_mode<synchronous>, transform_indices = @transform_1, window_bounds = array<i64: 32, 64>}, {pipeline_mode = #tpu.pipeline_mode<synchronous>, transform_indices = @transform_2, window_bounds = array<i64: 1, 64>}, {pipeline_mode = #tpu.pipeline_mode<synchronous>, transform_indices = @transform_3, window_bounds = array<i64: 64, 128>}, {pipeline_mode = #tpu.pipeline_mode<synchronous>, transform_indices = @transform_4, window_bounds = array<i64: 1, 128>}, {pipeline_mode = #tpu.pipeline_mode<synchronous>, transform_indices = @transform_5, window_bounds = array<i64: 32, 128>}, {pipeline_mode = #tpu.pipeline_mode<synchronous>, transform_indices = @transform_6, window_bounds = array<i64: 1, 128>}, {transform_indices = @transform_7, window_bounds = array<i64: 128, 128>}]} {
    %c0 = arith.constant 0 : index
    %c0_0 = arith.constant 0 : index
    %0 = vector.load %arg1[%c0, %c0_0] : memref<128x32xf32, #tpu.memory_space<vmem>>, vector<128x32xf32>
    %c0_1 = arith.constant 0 : index
    %c0_2 = arith.constant 0 : index
    %1 = vector.load %arg2[%c0_1, %c0_2] : memref<32x64xf32, #tpu.memory_space<vmem>>, vector<32x64xf32>
    %c0_3 = arith.constant 0 : index
    %c0_4 = arith.constant 0 : index
    %2 = vector.load %arg3[%c0_3, %c0_4] : memref<1x64xf32, #tpu.memory_space<vmem>>, vector<1x64xf32>
    %cst = arith.constant dense<0.000000e+00> : vector<128x64xf32>
    %3 = tpu.matmul %0, %1, %cst {dimension_numbers = #tpu.dot_dimension_numbers<[1], [0], [0], [1], [0, 0, 1, 1], [], []>} : vector<128x32xf32>, vector<32x64xf32>, vector<128x64xf32> -> vector<128x64xf32>
    %4 = vector.broadcast %2 : vector<1x64xf32> to vector<128x64xf32>
    %5 = arith.addf %3, %4 : vector<128x64xf32>
    %cst_5 = arith.constant 0.000000e+00 : f32
    %6 = vector.broadcast %cst_5 : f32 to vector<128x64xf32>
    %7 = arith.maximumf %5, %6 : vector<128x64xf32>
    %c0_6 = arith.constant 0 : index
    %c0_7 = arith.constant 0 : index
    %8 = vector.load %arg4[%c0_6, %c0_7] : memref<64x128xf32, #tpu.memory_space<vmem>>, vector<64x128xf32>
    %c0_8 = arith.constant 0 : index
    %c0_9 = arith.constant 0 : index
    %9 = vector.load %arg5[%c0_8, %c0_9] : memref<1x128xf32, #tpu.memory_space<vmem>>, vector<1x128xf32>
    %cst_10 = arith.constant dense<0.000000e+00> : vector<128x128xf32>
    %10 = tpu.matmul %7, %8, %cst_10 {dimension_numbers = #tpu.dot_dimension_numbers<[1], [0], [0], [1], [0, 0, 1, 1], [], []>} : vector<128x64xf32>, vector<64x128xf32>, vector<128x128xf32> -> vector<128x128xf32>
    %11 = vector.broadcast %9 : vector<1x128xf32> to vector<128x128xf32>
    %12 = arith.addf %10, %11 : vector<128x128xf32>
    %cst_11 = arith.constant 0.000000e+00 : f32
    %13 = vector.broadcast %cst_11 : f32 to vector<128x128xf32>
    %14 = arith.maximumf %12, %13 : vector<128x128xf32>
    %c0_12 = arith.constant 0 : index
    %c0_13 = arith.constant 0 : index
    %15 = vector.load %arg6[%c0_12, %c0_13] : memref<32x128xf32, #tpu.memory_space<vmem>>, vector<32x128xf32>
    %c0_14 = arith.constant 0 : index
    %c0_15 = arith.constant 0 : index
    %16 = vector.load %arg7[%c0_14, %c0_15] : memref<1x128xf32, #tpu.memory_space<vmem>>, vector<1x128xf32>
    %cst_16 = arith.constant dense<0.000000e+00> : vector<128x128xf32>
    %17 = tpu.matmul %0, %15, %cst_16 {dimension_numbers = #tpu.dot_dimension_numbers<[1], [0], [0], [1], [0, 0, 1, 1], [], []>} : vector<128x32xf32>, vector<32x128xf32>, vector<128x128xf32> -> vector<128x128xf32>
    %18 = vector.broadcast %16 : vector<1x128xf32> to vector<128x128xf32>
    %19 = arith.addf %17, %18 : vector<128x128xf32>
    %20 = arith.addf %14, %19 : vector<128x128xf32>
    %cst_17 = arith.constant 0.000000e+00 : f32
    %21 = vector.broadcast %cst_17 : f32 to vector<128x128xf32>
    %22 = arith.maximumf %20, %21 : vector<128x128xf32>
    %c0_18 = arith.constant 0 : index
    %c0_19 = arith.constant 0 : index
    %23 = vector.load %arg8[%c0_18, %c0_19] : memref<128x128xf32, #tpu.memory_space<vmem>>, vector<128x128xf32>
    tpu.vector_store %arg8[%c0_18, %c0_19], %22 {strides = array<i32>} : memref<128x128xf32, #tpu.memory_space<vmem>>, vector<128x128xf32>,
    return
  }
  func.func @transform_0(%arg0: i32) -> (i32, i32) {
    %c0_i32 = arith.constant 0 : i32
    %c0_i32_0 = arith.constant 0 : i32
    return %arg0, %c0_i32 : i32, i32
  }
  func.func @transform_1(%arg0: i32) -> (i32, i32) {
    %c0_i32 = arith.constant 0 : i32
    %c0_i32_0 = arith.constant 0 : i32
    %c0_i32_1 = arith.constant 0 : i32
    return %c0_i32, %c0_i32_0 : i32, i32
  }
  func.func @transform_2(%arg0: i32) -> (i32, i32) {
    %c0_i32 = arith.constant 0 : i32
    %c0_i32_0 = arith.constant 0 : i32
    %c0_i32_1 = arith.constant 0 : i32
    return %c0_i32, %c0_i32_0 : i32, i32
  }
  func.func @transform_3(%arg0: i32) -> (i32, i32) {
    %c0_i32 = arith.constant 0 : i32
    %c0_i32_0 = arith.constant 0 : i32
    %c0_i32_1 = arith.constant 0 : i32
    return %c0_i32, %c0_i32_0 : i32, i32
  }
  func.func @transform_4(%arg0: i32) -> (i32, i32) {
    %c0_i32 = arith.constant 0 : i32
    %c0_i32_0 = arith.constant 0 : i32
    %c0_i32_1 = arith.constant 0 : i32
    return %c0_i32, %c0_i32_0 : i32, i32
  }
  func.func @transform_5(%arg0: i32) -> (i32, i32) {
    %c0_i32 = arith.constant 0 : i32
    %c0_i32_0 = arith.constant 0 : i32
    %c0_i32_1 = arith.constant 0 : i32
    return %c0_i32, %c0_i32_0 : i32, i32
  }
  func.func @transform_6(%arg0: i32) -> (i32, i32) {
    %c0_i32 = arith.constant 0 : i32
    %c0_i32_0 = arith.constant 0 : i32
    %c0_i32_1 = arith.constant 0 : i32
    return %c0_i32, %c0_i32_0 : i32, i32
  }
  func.func @transform_7(%arg0: i32) -> (i32, i32) {
    %c0_i32 = arith.constant 0 : i32
    %c0_i32_0 = arith.constant 0 : i32
    return %arg0, %c0_i32 : i32, i32
  }
}

</mosaic_0001>

<llo_original>
// kernel: tpu_custom_call.1
$region0: #{tpu_custom_call.1}
  #allocation0 [shape = 'u32[]', space=smem, size = 0x4, offset = 0x4, fixed_abs, tag = 'smem constant byte address 0x4 - core index']
  #allocation1 [shape = 'u32[144,128]{1,0:T(1,128)}', space=vmem, size = 0x12000, scoped, tag = 'internal scratch']
  %s0 = inlined_call_operand.vmem [shape: f32[256,32], index: 0, kind: input, shape index: {}]
  %s1 = inlined_call_operand.vmem [shape: f32[32,64], index: 1, kind: input, shape index: {}]
  %s2 = inlined_call_operand.vmem [shape: f32[1,64], index: 2, kind: input, shape index: {}]
  %s3 = inlined_call_operand.vmem [shape: f32[64,128], index: 3, kind: input, shape index: {}]
  %s4 = inlined_call_operand.vmem [shape: f32[1,128], index: 4, kind: input, shape index: {}]
  %s5 = inlined_call_operand.vmem [shape: f32[32,128], index: 5, kind: input, shape index: {}]
  %s6 = inlined_call_operand.vmem [shape: f32[1,128], index: 6, kind: input, shape index: {}]
  %s7 = inlined_call_operand.hbm [shape: f32[256,128], index: 7, kind: output, shape index: {}]
  %s8 = sld [smem:[#allocation0]]
  $region61: #{tpu_custom_call.1} parent=0
    _
  %s10 = ssub.s32 1, %s8
  %s11 = scalar_select 0, %s10, %s8
  $region1: #{tpu_custom_call.1} parent=0
    #allocation2 [shape = 'u8[131072]{0}', space=vmem, size = 0x20000, scoped, tag = 'output window, operand 0']
    #allocation3 [shape = 's32[2]{0}', space=sflag, size = 0x8, scoped, tag = 'scoped memory for tpu_custom_call.1']
    %12 = vsyncpa [#allocation3], 0
    %s13 = scalar_lea.sflag [#allocation3], 1
    %14 = vsyncpa %s13, 0
    loop: start=0, step=1, limit=4
    $region2: #{tpu_custom_call.1} parent=1 // loop_pre_header
      _
    $region3: #{tpu_custom_call.1} parent=1 // loop_header
      %s16 = sphi 0, %s20
      %p17 = scmp.ge.s32.totalorder %s16, 4
      %s26 = sphi 0, %s28
      %s29 = sphi 0, %s26
      %s30 = sphi 0, %s29
      %s46 = sphi 0, %s30
      %s50 = sphi 0, %s50
      %s52 = sphi 0, %s50
      %s53 = sphi 0, %s52
      %s67 = sphi 0, %s53
      %s71 = sphi 0, %s71
      %s73 = sphi 0, %s71
      %s74 = sphi 0, %s73
      %s88 = sphi 0, %s74
      %s92 = sphi 0, %s92
      %s94 = sphi 0, %s92
      %s95 = sphi 0, %s94
      %s109 = sphi 0, %s95
      %s113 = sphi 0, %s113
      %s115 = sphi 0, %s113
      %s116 = sphi 0, %s115
      %s130 = sphi 0, %s116
      %s134 = sphi 0, %s134
      %s136 = sphi 0, %s134
      %s137 = sphi 0, %s136
      %s151 = sphi 0, %s137
      %s155 = sphi 0, %s155
      %s157 = sphi 0, %s155
      %s158 = sphi 0, %s157
      %s172 = sphi 0, %s158
      %s178 = sphi 0, %s180
      %s181 = sphi 0, %s178
      %s182 = sphi 0, %s181
      %s198 = sphi 0, %s182
    $region4: #{tpu_custom_call.1} parent=1 // loop_header_branch
      %19 = sbr.rel (%p17) target = $region8
    $region5: #{tpu_custom_call.1} parent=1 // loop_body
      %s21 = ssub.s32 %s16, 1
      %s22 = ssub.s32 %s16, 2
      %s23 = sadd.s32 %s16, 1
      %s24 = ssub.s32 %s16, %s23
      %p25 = scmp.eq.s32.totalorder %s24, 0
      %s27 = sadd.s32 %s26, 1
      %s28 = scalar_select %p25, %s26, %s27
      %p31 = pneg %p25
      %p32 = scmp.eq.s32.totalorder %s16, 1
      %p33 = por %p31, %p32
      %p34 = scmp.ne.s32.totalorder %s26, %s29
      %p35 = scmp.eq.s32.totalorder %s16, 0
      %p36 = por %p34, %p35
      %p37 = scmp.ne.s32.totalorder %s26, %s29
      %p38 = scmp.eq.s32.totalorder %s21, 1
      %p39 = por %p37, %p38
      %p40 = scmp.ne.s32.totalorder %s29, %s30
      %p41 = scmp.eq.s32.totalorder %s21, 0
      %p42 = por %p40, %p41
      %p43 = scmp.ne.s32.totalorder %s29, %s30
      %p44 = scmp.eq.s32.totalorder %s22, 1
      %p45 = por %p43, %p44
      %p47 = scmp.ne.s32.totalorder %s30, %s46
      %p48 = scmp.eq.s32.totalorder %s22, 0
      %p49 = por %p47, %p48
      %s51 = sadd.s32 %s50, 1
      %p54 = scmp.eq.s32.totalorder %s16, 1
      %p55 = scmp.ne.s32.totalorder %s50, %s52
      %p56 = scmp.eq.s32.totalorder %s16, 0
      %p57 = por %p55, %p56
      %p58 = scmp.ne.s32.totalorder %s50, %s52
      %p59 = scmp.eq.s32.totalorder %s21, 1
      %p60 = por %p58, %p59
      %p61 = scmp.ne.s32.totalorder %s52, %s53
      %p62 = scmp.eq.s32.totalorder %s21, 0
      %p63 = por %p61, %p62
      %p64 = scmp.ne.s32.totalorder %s52, %s53
      %p65 = scmp.eq.s32.totalorder %s22, 1
      %p66 = por %p64, %p65
      %p68 = scmp.ne.s32.totalorder %s53, %s67
      %p69 = scmp.eq.s32.totalorder %s22, 0
      %p70 = por %p68, %p69
      %s72 = sadd.s32 %s71, 1
      %p75 = scmp.eq.s32.totalorder %s16, 1
      %p76 = scmp.ne.s32.totalorder %s71, %s73
      %p77 = scmp.eq.s32.totalorder %s16, 0
      %p78 = por %p76, %p77
      %p79 = scmp.ne.s32.totalorder %s71, %s73
      %p80 = scmp.eq.s32.totalorder %s21, 1
      %p81 = por %p79, %p80
      %p82 = scmp.ne.s32.totalorder %s73, %s74
      %p83 = scmp.eq.s32.totalorder %s21, 0
      %p84 = por %p82, %p83
      %p85 = scmp.ne.s32.totalorder %s73, %s74
      %p86 = scmp.eq.s32.totalorder %s22, 1
      %p87 = por %p85, %p86
      %p89 = scmp.ne.s32.totalorder %s74, %s88
      %p90 = scmp.eq.s32.totalorder %s22, 0
      %p91 = por %p89, %p90
      %s93 = sadd.s32 %s92, 1
      %p96 = scmp.eq.s32.totalorder %s16, 1
      %p97 = scmp.ne.s32.totalorder %s92, %s94
      %p98 = scmp.eq.s32.totalorder %s16, 0
      %p99 = por %p97, %p98
      %p100 = scmp.ne.s32.totalorder %s92, %s94
      %p101 = scmp.eq.s32.totalorder %s21, 1
      %p102 = por %p100, %p101
      %p103 = scmp.ne.s32.totalorder %s94, %s95
      %p104 = scmp.eq.s32.totalorder %s21, 0
      %p105 = por %p103, %p104
      %p106 = scmp.ne.s32.totalorder %s94, %s95
      %p107 = scmp.eq.s32.totalorder %s22, 1
      %p108 = por %p106, %p107
      %p110 = scmp.ne.s32.totalorder %s95, %s109
      %p111 = scmp.eq.s32.totalorder %s22, 0
      %p112 = por %p110, %p111
      %s114 = sadd.s32 %s113, 1
      %p117 = scmp.eq.s32.totalorder %s16, 1
      %p118 = scmp.ne.s32.totalorder %s113, %s115
      %p119 = scmp.eq.s32.totalorder %s16, 0
      %p120 = por %p118, %p119
      %p121 = scmp.ne.s32.totalorder %s113, %s115
      %p122 = scmp.eq.s32.totalorder %s21, 1
      %p123 = por %p121, %p122
      %p124 = scmp.ne.s32.totalorder %s115, %s116
      %p125 = scmp.eq.s32.totalorder %s21, 0
      %p126 = por %p124, %p125
      %p127 = scmp.ne.s32.totalorder %s115, %s116
      %p128 = scmp.eq.s32.totalorder %s22, 1
      %p129 = por %p127, %p128
      %p131 = scmp.ne.s32.totalorder %s116, %s130
      %p132 = scmp.eq.s32.totalorder %s22, 0
      %p133 = por %p131, %p132
      %s135 = sadd.s32 %s134, 1
      %p138 = scmp.eq.s32.totalorder %s16, 1
      %p139 = scmp.ne.s32.totalorder %s134, %s136
      %p140 = scmp.eq.s32.totalorder %s16, 0
      %p141 = por %p139, %p140
      %p142 = scmp.ne.s32.totalorder %s134, %s136
      %p143 = scmp.eq.s32.totalorder %s21, 1
      %p144 = por %p142, %p143
      %p145 = scmp.ne.s32.totalorder %s136, %s137
      %p146 = scmp.eq.s32.totalorder %s21, 0
      %p147 = por %p145, %p146
      %p148 = scmp.ne.s32.totalorder %s136, %s137
      %p149 = scmp.eq.s32.totalorder %s22, 1
      %p150 = por %p148, %p149
      %p152 = scmp.ne.s32.totalorder %s137, %s151
      %p153 = scmp.eq.s32.totalorder %s22, 0
      %p154 = por %p152, %p153
      %s156 = sadd.s32 %s155, 1
      %p159 = scmp.eq.s32.totalorder %s16, 1
      %p160 = scmp.ne.s32.totalorder %s155, %s157
      %p161 = scmp.eq.s32.totalorder %s16, 0
      %p162 = por %p160, %p161
      %p163 = scmp.ne.s32.totalorder %s155, %s157
      %p164 = scmp.eq.s32.totalorder %s21, 1
      %p165 = por %p163, %p164
      %p166 = scmp.ne.s32.totalorder %s157, %s158
      %p167 = scmp.eq.s32.totalorder %s21, 0
      %p168 = por %p166, %p167
      %p169 = scmp.ne.s32.totalorder %s157, %s158
      %p170 = scmp.eq.s32.totalorder %s22, 1
      %p171 = por %p169, %p170
      %p173 = scmp.ne.s32.totalorder %s158, %s172
      %p174 = scmp.eq.s32.totalorder %s22, 0
      %p175 = por %p173, %p174
      %s176 = ssub.s32 %s16, %s23
      %p177 = scmp.eq.s32.totalorder %s176, 0
      %s179 = sadd.s32 %s178, 1
      %s180 = scalar_select %p177, %s178, %s179
      %p183 = pneg %p177
      %p184 = scmp.eq.s32.totalorder %s16, 1
      %p185 = por %p183, %p184
      %p186 = scmp.ne.s32.totalorder %s178, %s181
      %p187 = scmp.eq.s32.totalorder %s16, 0
      %p188 = por %p186, %p187
      %p189 = scmp.ne.s32.totalorder %s178, %s181
      %p190 = scmp.eq.s32.totalorder %s21, 1
      %p191 = por %p189, %p190
      %p192 = scmp.ne.s32.totalorder %s181, %s182
      %p193 = scmp.eq.s32.totalorder %s21, 0
      %p194 = por %p192, %p193
      %p195 = scmp.ne.s32.totalorder %s181, %s182
      %p196 = scmp.eq.s32.totalorder %s22, 1
      %p197 = por %p195, %p196
      %p199 = scmp.ne.s32.totalorder %s182, %s198
      %p200 = scmp.eq.s32.totalorder %s22, 0
      %p201 = por %p199, %p200
      %p202 = scmp.le.s32.totalorder 1, %s16
      %p203 = scmp.lt.s32.totalorder %s16, 3
      %p204 = pnand %p202, %p203
      %p205 = pneg %p204
      // Predicated region
      $region9: #{tpu_custom_call.1} parent=5 // pred_check
        _
      $region10: #{tpu_custom_call.1} parent=5 // pred_check_branch
        %207 = sbr.rel (%p204) target = $region12
      $region11: #{tpu_custom_call.1} parent=5 // pred_region
        %s208 = ssub.s32 %s16, 1
        // Predicated region
        $region13: #{tpu_custom_call.1} parent=11 // pred_check
          %p209 = pneg %p63
        $region14: #{tpu_custom_call.1} parent=11 // pred_check_branch
          %211 = sbr.rel (%p209) target = $region16
        $region15: #{tpu_custom_call.1} parent=11 // pred_region
          _
        $region16: #{tpu_custom_call.1} parent=11 // pred_fallthru
          _
        // Predicated region
        $region17: #{tpu_custom_call.1} parent=11 // pred_check
          %p212 = pneg %p84
        $region18: #{tpu_custom_call.1} parent=11 // pred_check_branch
          %214 = sbr.rel (%p212) target = $region20
        $region19: #{tpu_custom_call.1} parent=11 // pred_region
          _
        $region20: #{tpu_custom_call.1} parent=11 // pred_fallthru
          _
        // Predicated region
        $region21: #{tpu_custom_call.1} parent=11 // pred_check
          %p215 = pneg %p105
        $region22: #{tpu_custom_call.1} parent=11 // pred_check_branch
          %217 = sbr.rel (%p215) target = $region24
        $region23: #{tpu_custom_call.1} parent=11 // pred_region
          _
        $region24: #{tpu_custom_call.1} parent=11 // pred_fallthru
          _
        // Predicated region
        $region25: #{tpu_custom_call.1} parent=11 // pred_check
          %p218 = pneg %p126
        $region26: #{tpu_custom_call.1} parent=11 // pred_check_branch
          %220 = sbr.rel (%p218) target = $region28
        $region27: #{tpu_custom_call.1} parent=11 // pred_region
          _
        $region28: #{tpu_custom_call.1} parent=11 // pred_fallthru
          _
        // Predicated region
        $region29: #{tpu_custom_call.1} parent=11 // pred_check
          %p221 = pneg %p147
        $region30: #{tpu_custom_call.1} parent=11 // pred_check_branch
          %223 = sbr.rel (%p221) target = $region32
        $region31: #{tpu_custom_call.1} parent=11 // pred_region
          _
        $region32: #{tpu_custom_call.1} parent=11 // pred_fallthru
          _
        // Predicated region
        $region33: #{tpu_custom_call.1} parent=11 // pred_check
          %p224 = pneg %p168
        $region34: #{tpu_custom_call.1} parent=11 // pred_check_branch
          %226 = sbr.rel (%p224) target = $region36
        $region35: #{tpu_custom_call.1} parent=11 // pred_region
          _
        $region36: #{tpu_custom_call.1} parent=11 // pred_fallthru
          _
      $region12: #{tpu_custom_call.1} parent=5 // pred_fallthru
        _
      %p227 = scmp.lt.s32.totalorder %s16, 2
      // Predicated region
      $region37: #{tpu_custom_call.1} parent=5 // pred_check
        %p228 = pneg %p227
      $region38: #{tpu_custom_call.1} parent=5 // pred_check_branch
        %230 = sbr.rel (%p228) target = $region40
      $region39: #{tpu_custom_call.1} parent=5 // pred_region
        // Predicated region
        $region41: #{tpu_custom_call.1} parent=39 // pred_check
          %p231 = pneg %p36
        $region42: #{tpu_custom_call.1} parent=39 // pred_check_branch
          %233 = sbr.rel (%p231) target = $region44
        $region43: #{tpu_custom_call.1} parent=39 // pred_region
          %s234 = smul.u32 16, %s16
          %p235 = scmp.lt.s32.totalorder %s234, 31
          %s236 = scalar_select %p235, %s234, 31
          %s237 = smul.addr %s236, 8
          %s238 = scalar_lea.vmem %s0, %s237
          %s239 = smul.u32 16, %s16
        $region44: #{tpu_custom_call.1} parent=39 // pred_fallthru
          _
      $region40: #{tpu_custom_call.1} parent=5 // pred_fallthru
        _
      %p240 = scmp.le.s32.totalorder 1, %s16
      %p241 = scmp.lt.s32.totalorder %s16, 3
      %p242 = pnand %p240, %p241
      %p243 = pneg %p242
      // Predicated region
      $region45: #{tpu_custom_call.1} parent=5 // pred_check
        _
      $region46: #{tpu_custom_call.1} parent=5 // pred_check_branch
        %245 = sbr.rel (%p242) target = $region48
      $region47: #{tpu_custom_call.1} parent=5 // pred_region
        %s246 = ssub.s32 %s16, 1
        %s247 = smul.u32 16, %s21
        %p248 = scmp.lt.s32.totalorder %s247, 31
        %s249 = scalar_select %p248, %s247, 31
        %s250 = smul.addr %s249, 8
        %s251 = scalar_lea.vmem %s0, %s250
        %p252 = pneg %p42
        %p253 = pneg %p39
        %p254 = pneg %p63
        %p255 = pneg %p60
        %p256 = pneg %p84
        %p257 = pneg %p81
        %p258 = pneg %p105
        %p259 = pneg %p102
        %p260 = pneg %p126
        %p261 = pneg %p123
        %p262 = pneg %p147
        %p263 = pneg %p144
        %p264 = pneg %p168
        %p265 = pneg %p165
        %p266 = pneg %p194
        %p267 = pneg %p191
        %s268 = sand.u32 %s181, 1
        %s269 = scalar_lea.sflag [#allocation3], %s268
        %s270 = sand.u32 %s181, 1
        %s271 = smul.addr %s270, 128
        %s272 = scalar_lea.vmem [#allocation2], %s271
        %s273 = smul.u32 16, %s21
        %p274 = scmp.lt.s32.totalorder %s273, 31
        %s275 = scalar_select %p274, %s273, 31
        %s276 = smul.addr %s275, 8
        %s277 = scalar_lea.vmem %s0, %s276
        %s278 = smul.u32 16, %s21
        %s279 = smul.u32 16, %s21
        %v280 = vld [vmem:[%s277] sm:$0xff]
        %v281 = vld [vmem:[%s277 + $0x8] sm:$0xff]
        %v282 = vld [vmem:[%s277 + $0x10] sm:$0xff]
        %v283 = vld [vmem:[%s277 + $0x18] sm:$0xff]
        %v284 = vld [vmem:[%s277 + $0x20] sm:$0xff]
        %v285 = vld [vmem:[%s277 + $0x28] sm:$0xff]
        %v286 = vld [vmem:[%s277 + $0x30] sm:$0xff]
        %v287 = vld [vmem:[%s277 + $0x38] sm:$0xff]
        %v288 = vld [vmem:[%s277 + $0x40] sm:$0xff]
        %v289 = vld [vmem:[%s277 + $0x48] sm:$0xff]
        %v290 = vld [vmem:[%s277 + $0x50] sm:$0xff]
        %v291 = vld [vmem:[%s277 + $0x58] sm:$0xff]
        %v292 = vld [vmem:[%s277 + $0x60] sm:$0xff]
        %v293 = vld [vmem:[%s277 + $0x68] sm:$0xff]
        %v294 = vld [vmem:[%s277 + $0x70] sm:$0xff]
        %v295 = vld [vmem:[%s277 + $0x78] sm:$0xff]
        %v296 = vld [vmem:[%s1] sm:$0xff]
        %v297 = vld [vmem:[%s1 + $0x8] sm:$0xff]
        %v298 = vld [vmem:[%s1 + $0x10] sm:$0xff]
        %v299 = vld [vmem:[%s1 + $0x18] sm:$0xff]
        %v300 = vld [vmem:[%s2] sm:$0x1]
        %v302 = vlaneseq
        %v303 = vshrl.u32 %v302, 7
        %v304 = vsub.s32 0, %v303
        %v305 = vrot.slane %v300, %v304
        %vm307 = vcmask 261120
        %v309 = vsel %vm307, %v280, 0
        %v312 = vsel %vm307, %v281, 0
        %v315 = vsel %vm307, %v282, 0
        %v318 = vsel %vm307, %v283, 0
        %v321 = vsel %vm307, %v284, 0
        %v324 = vsel %vm307, %v285, 0
        %v327 = vsel %vm307, %v286, 0
        %v330 = vsel %vm307, %v287, 0
        %v333 = vsel %vm307, %v288, 0
        %v336 = vsel %vm307, %v289, 0
        %v339 = vsel %vm307, %v290, 0
        %v342 = vsel %vm307, %v291, 0
        %v345 = vsel %vm307, %v292, 0
        %v348 = vsel %vm307, %v293, 0
        %v351 = vsel %vm307, %v294, 0
        %v354 = vsel %vm307, %v295, 0
        %356 = vmatprep.subr.mxu0 0.0
        %357 = vmatpush1.msra.mxu0 %v296
        %358 = vmatprep.subr.mxu0 0.0
        %359 = vmatpush1.msra.mxu0 %v297
        %360 = vmatprep.subr.mxu0 0.0
        %361 = vmatpush1.msra.mxu0 %v298
        %362 = vmatprep.subr.mxu0 0.0
        %363 = vmatpush1.msra.mxu0 %v299
        %364 = vmatprep.subr.mxu0 0.0
        %365 = vmatpush1.msra.mxu0 0.0
        %366 = vmatprep.subr.mxu0 0.0
        %367 = vmatpush1.msra.mxu0 0.0
        %368 = vmatprep.subr.mxu0 0.0
        %369 = vmatpush1.msra.mxu0 0.0
        %370 = vmatprep.subr.mxu0 0.0
        %371 = vmatpush1.msra.mxu0 0.0
        %372 = vmatprep.subr.mxu0 0.0
        %373 = vmatpush1.msra.mxu0 0.0
        %374 = vmatprep.subr.mxu0 0.0
        %375 = vmatpush1.msra.mxu0 0.0
        %376 = vmatprep.subr.mxu0 0.0
        %377 = vmatpush1.msra.mxu0 0.0
        %378 = vmatprep.subr.mxu0 0.0
        %379 = vmatpush1.msra.mxu0 0.0
        %380 = vmatprep.subr.mxu0 0.0
        %381 = vmatpush1.msra.mxu0 0.0
        %382 = vmatprep.subr.mxu0 0.0
        %383 = vmatpush1.msra.mxu0 0.0
        %384 = vmatprep.subr.mxu0 0.0
        %385 = vmatpush1.msra.mxu0 0.0
        %386 = vmatprep.subr.mxu0 0.0
        %387 = vmatpush1.msra.mxu0 0.0
        %388 = vmatprep.subr.mxu0 0.0
        %389 = vmatpush1.msra.mxu0 0.0
        %390 = vmatprep.subr.mxu0 0.0
        %391 = vmatpush1.msra.mxu0 0.0
        %392 = vmatprep.subr.mxu0 0.0
        %393 = vmatpush1.msra.mxu0 0.0
        %394 = vmatprep.subr.mxu0 0.0
        %395 = vmatpush1.msra.mxu0 0.0
        %396 = vmatprep.subr.mxu0 0.0
        %397 = vmatpush1.msra.mxu0 0.0
        %398 = vmatprep.subr.mxu0 0.0
        %399 = vmatpush1.msra.mxu0 0.0
        %400 = vmatprep.subr.mxu0 0.0
        %401 = vmatpush1.msra.mxu0 0.0
        %402 = vmatprep.subr.mxu0 0.0
        %403 = vmatpush1.msra.mxu0 0.0
        %404 = vmatprep.subr.mxu0 0.0
        %405 = vmatpush1.msra.mxu0 0.0
        %406 = vmatprep.subr.mxu0 0.0
        %407 = vmatpush1.msra.mxu0 0.0
        %408 = vmatprep.subr.mxu0 0.0
        %409 = vmatpush1.msra.mxu0 0.0
        %410 = vmatprep.subr.mxu0 0.0
        %411 = vmatpush1.msra.mxu0 0.0
        %412 = vmatprep.subr.mxu0 0.0
        %413 = vmatpush1.msra.mxu0 0.0
        %414 = vmatprep.subr.mxu0 0.0
        %415 = vmatpush1.msra.mxu0 0.0
        %416 = vmatprep.subr.mxu0 0.0
        %417 = vmatpush1.msra.mxu0 0.0
        %418 = vmatprep.subr.mxu0 0.0
        %419 = vmatpush1.msra.mxu0 0.0
        %420 = vmatprep.mubr.f32.mxu0 0.0
        %421 = vmatmul.mubr.f32.gmra.mrb[0].mxu0 %v309
        %v422 = vpop.f32.mrb[0].mxu0
        %v423 = vadd.f32 %v305, %v422
        %v424 = vpop.f32.mrb[0].mxu0
        %425 = vmatprep.mubr.f32.mxu0 0.0
        %426 = vmatmul.mubr.f32.gmra.mrb[0].mxu0 %v312
        %v427 = vpop.f32.mrb[0].mxu0
        %v428 = vadd.f32 %v305, %v427
        %v429 = vpop.f32.mrb[0].mxu0
        %430 = vmatprep.mubr.f32.mxu0 0.0
        %431 = vmatmul.mubr.f32.gmra.mrb[0].mxu0 %v315
        %v432 = vpop.f32.mrb[0].mxu0
        %v433 = vadd.f32 %v305, %v432
        %v434 = vpop.f32.mrb[0].mxu0
        %435 = vmatprep.mubr.f32.mxu0 0.0
        %436 = vmatmul.mubr.f32.gmra.mrb[0].mxu0 %v318
        %v437 = vpop.f32.mrb[0].mxu0
        %v438 = vadd.f32 %v305, %v437
        %v439 = vpop.f32.mrb[0].mxu0
        %440 = vmatprep.mubr.f32.mxu0 0.0
        %441 = vmatmul.mubr.f32.gmra.mrb[0].mxu0 %v321
        %v442 = vpop.f32.mrb[0].mxu0
        %v443 = vadd.f32 %v305, %v442
        %v444 = vpop.f32.mrb[0].mxu0
        %445 = vmatprep.mubr.f32.mxu0 0.0
        %446 = vmatmul.mubr.f32.gmra.mrb[0].mxu0 %v324
        %v447 = vpop.f32.mrb[0].mxu0
        %v448 = vadd.f32 %v305, %v447
        %v449 = vpop.f32.mrb[0].mxu0
        %450 = vmatprep.mubr.f32.mxu0 0.0
        %451 = vmatmul.mubr.f32.gmra.mrb[0].mxu0 %v327
        %v452 = vpop.f32.mrb[0].mxu0
        %v453 = vadd.f32 %v305, %v452
        %v454 = vpop.f32.mrb[0].mxu0
        %455 = vmatprep.mubr.f32.mxu0 0.0
        %456 = vmatmul.mubr.f32.gmra.mrb[0].mxu0 %v330
        %v457 = vpop.f32.mrb[0].mxu0
        %v458 = vadd.f32 %v305, %v457
        %v459 = vpop.f32.mrb[0].mxu0
        %460 = vmatprep.mubr.f32.mxu0 0.0
        %461 = vmatmul.mubr.f32.gmra.mrb[0].mxu0 %v333
        %v462 = vpop.f32.mrb[0].mxu0
        %v463 = vadd.f32 %v305, %v462
        %v464 = vpop.f32.mrb[0].mxu0
        %465 = vmatprep.mubr.f32.mxu0 0.0
        %466 = vmatmul.mubr.f32.gmra.mrb[0].mxu0 %v336
        %v467 = vpop.f32.mrb[0].mxu0
        %v468 = vadd.f32 %v305, %v467
        %v469 = vpop.f32.mrb[0].mxu0
        %470 = vmatprep.mubr.f32.mxu0 0.0
        %471 = vmatmul.mubr.f32.gmra.mrb[0].mxu0 %v339
        %v472 = vpop.f32.mrb[0].mxu0
        %v473 = vadd.f32 %v305, %v472
        %v474 = vpop.f32.mrb[0].mxu0
        %475 = vmatprep.mubr.f32.mxu0 0.0
        %476 = vmatmul.mubr.f32.gmra.mrb[0].mxu0 %v342
        %v477 = vpop.f32.mrb[0].mxu0
        %v478 = vadd.f32 %v305, %v477
        %v479 = vpop.f32.mrb[0].mxu0
        %480 = vmatprep.mubr.f32.mxu0 0.0
        %481 = vmatmul.mubr.f32.gmra.mrb[0].mxu0 %v345
        %v482 = vpop.f32.mrb[0].mxu0
        %v483 = vadd.f32 %v305, %v482
        %v484 = vpop.f32.mrb[0].mxu0
        %485 = vmatprep.mubr.f32.mxu0 0.0
        %486 = vmatmul.mubr.f32.gmra.mrb[0].mxu0 %v348
        %v487 = vpop.f32.mrb[0].mxu0
        %v488 = vadd.f32 %v305, %v487
        %v489 = vpop.f32.mrb[0].mxu0
        %490 = vmatprep.mubr.f32.mxu0 0.0
        %491 = vmatmul.mubr.f32.gmra.mrb[0].mxu0 %v351
        %v492 = vpop.f32.mrb[0].mxu0
        %v493 = vadd.f32 %v305, %v492
        %v494 = vpop.f32.mrb[0].mxu0
        %495 = vmatprep.mubr.f32.mxu0 0.0
        %496 = vmatmul.mubr.f32.gmra.mrb[0].mxu0 %v354
        %v497 = vpop.f32.mrb[0].mxu0
        %v498 = vadd.f32 %v305, %v497
        %v499 = vpop.f32.mrb[0].mxu0
        %500 = vdwg.mxu0
        %v501 = vmax.f32 %v423, 0.0
        %v502 = vmax.f32 %v428, 0.0
        %v503 = vmax.f32 %v433, 0.0
        %v504 = vmax.f32 %v438, 0.0
        %v505 = vmax.f32 %v443, 0.0
        %v506 = vmax.f32 %v448, 0.0
        %v507 = vmax.f32 %v453, 0.0
        %v508 = vmax.f32 %v458, 0.0
        %v509 = vmax.f32 %v463, 0.0
        %v510 = vmax.f32 %v468, 0.0
        %v511 = vmax.f32 %v473, 0.0
        %v512 = vmax.f32 %v478, 0.0
        %v513 = vmax.f32 %v483, 0.0
        %v514 = vmax.f32 %v488, 0.0
        %v515 = vmax.f32 %v493, 0.0
        %v516 = vmax.f32 %v498, 0.0
        %v517 = vld [vmem:[%s3] sm:$0xff]
        %v518 = vld [vmem:[%s3 + $0x8] sm:$0xff]
        %v519 = vld [vmem:[%s3 + $0x10] sm:$0xff]
        %v520 = vld [vmem:[%s3 + $0x18] sm:$0xff]
        %v521 = vld [vmem:[%s3 + $0x20] sm:$0xff]
        %v522 = vld [vmem:[%s3 + $0x28] sm:$0xff]
        %v523 = vld [vmem:[%s3 + $0x30] sm:$0xff]
        %v524 = vld [vmem:[%s3 + $0x38] sm:$0xff]
        %v525 = vld [vmem:[%s4] sm:$0x1]
        %v527 = vlaneseq
        %v528 = vshrl.u32 %v527, 7
        %v529 = vsub.s32 0, %v528
        %v530 = vrot.slane %v525, %v529
        %vm532 = vcmask 523264
        %v534 = vsel %vm532, %v501, 0
        %v537 = vsel %vm532, %v502, 0
        %v540 = vsel %vm532, %v503, 0
        %v543 = vsel %vm532, %v504, 0
        %v546 = vsel %vm532, %v505, 0
        %v549 = vsel %vm532, %v506, 0
        %v552 = vsel %vm532, %v507, 0
        %v555 = vsel %vm532, %v508, 0
        %v558 = vsel %vm532, %v509, 0
        %v561 = vsel %vm532, %v510, 0
        %v564 = vsel %vm532, %v511, 0
        %v567 = vsel %vm532, %v512, 0
        %v570 = vsel %vm532, %v513, 0
        %v573 = vsel %vm532, %v514, 0
        %v576 = vsel %vm532, %v515, 0
        %v579 = vsel %vm532, %v516, 0
        %581 = vmatprep.subr.mxu0 0.0
        %582 = vmatpush1.msra.mxu0 %v517
        %583 = vmatprep.subr.mxu0 0.0
        %584 = vmatpush1.msra.mxu0 %v518
        %585 = vmatprep.subr.mxu0 0.0
        %586 = vmatpush1.msra.mxu0 %v519
        %587 = vmatprep.subr.mxu0 0.0
        %588 = vmatpush1.msra.mxu0 %v520
        %589 = vmatprep.subr.mxu0 0.0
        %590 = vmatpush1.msra.mxu0 %v521
        %591 = vmatprep.subr.mxu0 0.0
        %592 = vmatpush1.msra.mxu0 %v522
        %593 = vmatprep.subr.mxu0 0.0
        %594 = vmatpush1.msra.mxu0 %v523
        %595 = vmatprep.subr.mxu0 0.0
        %596 = vmatpush1.msra.mxu0 %v524
        %597 = vmatprep.subr.mxu0 0.0
        %598 = vmatpush1.msra.mxu0 0.0
        %599 = vmatprep.subr.mxu0 0.0
        %600 = vmatpush1.msra.mxu0 0.0
        %601 = vmatprep.subr.mxu0 0.0
        %602 = vmatpush1.msra.mxu0 0.0
        %603 = vmatprep.subr.mxu0 0.0
        %604 = vmatpush1.msra.mxu0 0.0
        %605 = vmatprep.subr.mxu0 0.0
        %606 = vmatpush1.msra.mxu0 0.0
        %607 = vmatprep.subr.mxu0 0.0
        %608 = vmatpush1.msra.mxu0 0.0
        %609 = vmatprep.subr.mxu0 0.0
        %610 = vmatpush1.msra.mxu0 0.0
        %611 = vmatprep.subr.mxu0 0.0
        %612 = vmatpush1.msra.mxu0 0.0
        %613 = vmatprep.subr.mxu0 0.0
        %614 = vmatpush1.msra.mxu0 0.0
        %615 = vmatprep.subr.mxu0 0.0
        %616 = vmatpush1.msra.mxu0 0.0
        %617 = vmatprep.subr.mxu0 0.0
        %618 = vmatpush1.msra.mxu0 0.0
        %619 = vmatprep.subr.mxu0 0.0
        %620 = vmatpush1.msra.mxu0 0.0
        %621 = vmatprep.subr.mxu0 0.0
        %622 = vmatpush1.msra.mxu0 0.0
        %623 = vmatprep.subr.mxu0 0.0
        %624 = vmatpush1.msra.mxu0 0.0
        %625 = vmatprep.subr.mxu0 0.0
        %626 = vmatpush1.msra.mxu0 0.0
        %627 = vmatprep.subr.mxu0 0.0
        %628 = vmatpush1.msra.mxu0 0.0
        %629 = vmatprep.subr.mxu0 0.0
        %630 = vmatpush1.msra.mxu0 0.0
        %631 = vmatprep.subr.mxu0 0.0
        %632 = vmatpush1.msra.mxu0 0.0
        %633 = vmatprep.subr.mxu0 0.0
        %634 = vmatpush1.msra.mxu0 0.0
        %635 = vmatprep.subr.mxu0 0.0
        %636 = vmatpush1.msra.mxu0 0.0
        %637 = vmatprep.subr.mxu0 0.0
        %638 = vmatpush1.msra.mxu0 0.0
        %639 = vmatprep.subr.mxu0 0.0
        %640 = vmatpush1.msra.mxu0 0.0
        %641 = vmatprep.subr.mxu0 0.0
        %642 = vmatpush1.msra.mxu0 0.0
        %643 = vmatprep.subr.mxu0 0.0
        %644 = vmatpush1.msra.mxu0 0.0
        %645 = vmatprep.mubr.f32.mxu0 0.0
        %646 = vmatmul.mubr.f32.gmra.mrb[0].mxu0 %v534
        %v647 = vpop.f32.mrb[0].mxu0
        %v648 = vadd.f32 %v530, %v647
        %v649 = vpop.f32.mrb[0].mxu0
        %650 = vmatprep.mubr.f32.mxu0 0.0
        %651 = vmatmul.mubr.f32.gmra.mrb[0].mxu0 %v537
        %v652 = vpop.f32.mrb[0].mxu0
        %v653 = vadd.f32 %v530, %v652
        %v654 = vpop.f32.mrb[0].mxu0
        %655 = vmatprep.mubr.f32.mxu0 0.0
        %656 = vmatmul.mubr.f32.gmra.mrb[0].mxu0 %v540
        %v657 = vpop.f32.mrb[0].mxu0
        %v658 = vadd.f32 %v530, %v657
        %v659 = vpop.f32.mrb[0].mxu0
        %660 = vmatprep.mubr.f32.mxu0 0.0
        %661 = vmatmul.mubr.f32.gmra.mrb[0].mxu0 %v543
        %v662 = vpop.f32.mrb[0].mxu0
        %v663 = vadd.f32 %v530, %v662
        %v664 = vpop.f32.mrb[0].mxu0
        %665 = vmatprep.mubr.f32.mxu0 0.0
        %666 = vmatmul.mubr.f32.gmra.mrb[0].mxu0 %v546
        %v667 = vpop.f32.mrb[0].mxu0
        %v668 = vadd.f32 %v530, %v667
        %v669 = vpop.f32.mrb[0].mxu0
        %670 = vmatprep.mubr.f32.mxu0 0.0
        %671 = vmatmul.mubr.f32.gmra.mrb[0].mxu0 %v549
        %v672 = vpop.f32.mrb[0].mxu0
        %v673 = vadd.f32 %v530, %v672
        %v674 = vpop.f32.mrb[0].mxu0
        %675 = vmatprep.mubr.f32.mxu0 0.0
        %676 = vmatmul.mubr.f32.gmra.mrb[0].mxu0 %v552
        %v677 = vpop.f32.mrb[0].mxu0
        %v678 = vadd.f32 %v530, %v677
        %v679 = vpop.f32.mrb[0].mxu0
        %680 = vmatprep.mubr.f32.mxu0 0.0
        %681 = vmatmul.mubr.f32.gmra.mrb[0].mxu0 %v555
        %v682 = vpop.f32.mrb[0].mxu0
        %v683 = vadd.f32 %v530, %v682
        %v684 = vpop.f32.mrb[0].mxu0
        %685 = vmatprep.mubr.f32.mxu0 0.0
        %686 = vmatmul.mubr.f32.gmra.mrb[0].mxu0 %v558
        %v687 = vpop.f32.mrb[0].mxu0
        %v688 = vadd.f32 %v530, %v687
        %v689 = vpop.f32.mrb[0].mxu0
        %690 = vmatprep.mubr.f32.mxu0 0.0
        %691 = vmatmul.mubr.f32.gmra.mrb[0].mxu0 %v561
        %v692 = vpop.f32.mrb[0].mxu0
        %v693 = vadd.f32 %v530, %v692
        %v694 = vpop.f32.mrb[0].mxu0
        %695 = vmatprep.mubr.f32.mxu0 0.0
        %696 = vmatmul.mubr.f32.gmra.mrb[0].mxu0 %v564
        %v697 = vpop.f32.mrb[0].mxu0
        %v698 = vadd.f32 %v530, %v697
        %v699 = vpop.f32.mrb[0].mxu0
        %700 = vmatprep.mubr.f32.mxu0 0.0
        %701 = vmatmul.mubr.f32.gmra.mrb[0].mxu0 %v567
        %v702 = vpop.f32.mrb[0].mxu0
        %v703 = vadd.f32 %v530, %v702
        %v704 = vpop.f32.mrb[0].mxu0
        %705 = vmatprep.mubr.f32.mxu0 0.0
        %706 = vmatmul.mubr.f32.gmra.mrb[0].mxu0 %v570
        %v707 = vpop.f32.mrb[0].mxu0
        %v708 = vadd.f32 %v530, %v707
        %v709 = vpop.f32.mrb[0].mxu0
        %710 = vmatprep.mubr.f32.mxu0 0.0
        %711 = vmatmul.mubr.f32.gmra.mrb[0].mxu0 %v573
        %v712 = vpop.f32.mrb[0].mxu0
        %v713 = vadd.f32 %v530, %v712
        %v714 = vpop.f32.mrb[0].mxu0
        %715 = vmatprep.mubr.f32.mxu0 0.0
        %716 = vmatmul.mubr.f32.gmra.mrb[0].mxu0 %v576
        %v717 = vpop.f32.mrb[0].mxu0
        %v718 = vadd.f32 %v530, %v717
        %v719 = vpop.f32.mrb[0].mxu0
        %720 = vmatprep.mubr.f32.mxu0 0.0
        %721 = vmatmul.mubr.f32.gmra.mrb[0].mxu0 %v579
        %v722 = vpop.f32.mrb[0].mxu0
        %v723 = vadd.f32 %v530, %v722
        %v724 = vpop.f32.mrb[0].mxu0
        %725 = vdwg.mxu0
        %v726 = vmax.f32 %v648, 0.0
        %v727 = vmax.f32 %v653, 0.0
        %v728 = vmax.f32 %v658, 0.0
        %v729 = vmax.f32 %v663, 0.0
        %v730 = vmax.f32 %v668, 0.0
        %v731 = vmax.f32 %v673, 0.0
        %v732 = vmax.f32 %v678, 0.0
        %v733 = vmax.f32 %v683, 0.0
        %v734 = vmax.f32 %v688, 0.0
        %v735 = vmax.f32 %v693, 0.0
        %v736 = vmax.f32 %v698, 0.0
        %v737 = vmax.f32 %v703, 0.0
        %v738 = vmax.f32 %v708, 0.0
        %v739 = vmax.f32 %v713, 0.0
        %v740 = vmax.f32 %v718, 0.0
        %v741 = vmax.f32 %v723, 0.0
        %v742 = vld [vmem:[%s5] sm:$0xff]
        %v743 = vld [vmem:[%s5 + $0x8] sm:$0xff]
        %v744 = vld [vmem:[%s5 + $0x10] sm:$0xff]
        %v745 = vld [vmem:[%s5 + $0x18] sm:$0xff]
        %v746 = vld [vmem:[%s6] sm:$0x1]
        %v748 = vlaneseq
        %v749 = vshrl.u32 %v748, 7
        %v750 = vsub.s32 0, %v749
        %v751 = vrot.slane %v746, %v750
        %753 = vmatprep.subr.mxu0 0.0
        %754 = vmatpush1.msra.mxu0 %v742
        %755 = vmatprep.subr.mxu0 0.0
        %756 = vmatpush1.msra.mxu0 %v743
        %757 = vmatprep.subr.mxu0 0.0
        %758 = vmatpush1.msra.mxu0 %v744
        %759 = vmatprep.subr.mxu0 0.0
        %760 = vmatpush1.msra.mxu0 %v745
        %761 = vmatprep.subr.mxu0 0.0
        %762 = vmatpush1.msra.mxu0 0.0
        %763 = vmatprep.subr.mxu0 0.0
        %764 = vmatpush1.msra.mxu0 0.0
        %765 = vmatprep.subr.mxu0 0.0
        %766 = vmatpush1.msra.mxu0 0.0
        %767 = vmatprep.subr.mxu0 0.0
        %768 = vmatpush1.msra.mxu0 0.0
        %769 = vmatprep.subr.mxu0 0.0
        %770 = vmatpush1.msra.mxu0 0.0
        %771 = vmatprep.subr.mxu0 0.0
        %772 = vmatpush1.msra.mxu0 0.0
        %773 = vmatprep.subr.mxu0 0.0
        %774 = vmatpush1.msra.mxu0 0.0
        %775 = vmatprep.subr.mxu0 0.0
        %776 = vmatpush1.msra.mxu0 0.0
        %777 = vmatprep.subr.mxu0 0.0
        %778 = vmatpush1.msra.mxu0 0.0
        %779 = vmatprep.subr.mxu0 0.0
        %780 = vmatpush1.msra.mxu0 0.0
        %781 = vmatprep.subr.mxu0 0.0
        %782 = vmatpush1.msra.mxu0 0.0
        %783 = vmatprep.subr.mxu0 0.0
        %784 = vmatpush1.msra.mxu0 0.0
        %785 = vmatprep.subr.mxu0 0.0
        %786 = vmatpush1.msra.mxu0 0.0
        %787 = vmatprep.subr.mxu0 0.0
        %788 = vmatpush1.msra.mxu0 0.0
        %789 = vmatprep.subr.mxu0 0.0
        %790 = vmatpush1.msra.mxu0 0.0
        %791 = vmatprep.subr.mxu0 0.0
        %792 = vmatpush1.msra.mxu0 0.0
        %793 = vmatprep.subr.mxu0 0.0
        %794 = vmatpush1.msra.mxu0 0.0
        %795 = vmatprep.subr.mxu0 0.0
        %796 = vmatpush1.msra.mxu0 0.0
        %797 = vmatprep.subr.mxu0 0.0
        %798 = vmatpush1.msra.mxu0 0.0
        %799 = vmatprep.subr.mxu0 0.0
        %800 = vmatpush1.msra.mxu0 0.0
        %801 = vmatprep.subr.mxu0 0.0
        %802 = vmatpush1.msra.mxu0 0.0
        %803 = vmatprep.subr.mxu0 0.0
        %804 = vmatpush1.msra.mxu0 0.0
        %805 = vmatprep.subr.mxu0 0.0
        %806 = vmatpush1.msra.mxu0 0.0
        %807 = vmatprep.subr.mxu0 0.0
        %808 = vmatpush1.msra.mxu0 0.0
        %809 = vmatprep.subr.mxu0 0.0
        %810 = vmatpush1.msra.mxu0 0.0
        %811 = vmatprep.subr.mxu0 0.0
        %812 = vmatpush1.msra.mxu0 0.0
        %813 = vmatprep.subr.mxu0 0.0
        %814 = vmatpush1.msra.mxu0 0.0
        %815 = vmatprep.subr.mxu0 0.0
        %816 = vmatpush1.msra.mxu0 0.0
        %817 = vmatprep.mubr.f32.mxu0 0.0
        %818 = vmatmul.mubr.f32.gmra.mrb[0].mxu0 %v309
        %v819 = vpop.f32.mrb[0].mxu0
        %v820 = vadd.f32 %v751, %v819
        %v821 = vpop.f32.mrb[0].mxu0
        %822 = vmatprep.mubr.f32.mxu0 0.0
        %823 = vmatmul.mubr.f32.gmra.mrb[0].mxu0 %v312
        %v824 = vpop.f32.mrb[0].mxu0
        %v825 = vadd.f32 %v751, %v824
        %v826 = vpop.f32.mrb[0].mxu0
        %827 = vmatprep.mubr.f32.mxu0 0.0
        %828 = vmatmul.mubr.f32.gmra.mrb[0].mxu0 %v315
        %v829 = vpop.f32.mrb[0].mxu0
        %v830 = vadd.f32 %v751, %v829
        %v831 = vpop.f32.mrb[0].mxu0
        %832 = vmatprep.mubr.f32.mxu0 0.0
        %833 = vmatmul.mubr.f32.gmra.mrb[0].mxu0 %v318
        %v834 = vpop.f32.mrb[0].mxu0
        %v835 = vadd.f32 %v751, %v834
        %v836 = vpop.f32.mrb[0].mxu0
        %837 = vmatprep.mubr.f32.mxu0 0.0
        %838 = vmatmul.mubr.f32.gmra.mrb[0].mxu0 %v321
        %v839 = vpop.f32.mrb[0].mxu0
        %v840 = vadd.f32 %v751, %v839
        %v841 = vpop.f32.mrb[0].mxu0
        %842 = vmatprep.mubr.f32.mxu0 0.0
        %843 = vmatmul.mubr.f32.gmra.mrb[0].mxu0 %v324
        %v844 = vpop.f32.mrb[0].mxu0
        %v845 = vadd.f32 %v751, %v844
        %v846 = vpop.f32.mrb[0].mxu0
        %847 = vmatprep.mubr.f32.mxu0 0.0
        %848 = vmatmul.mubr.f32.gmra.mrb[0].mxu0 %v327
        %v849 = vpop.f32.mrb[0].mxu0
        %v850 = vadd.f32 %v751, %v849
        %v851 = vpop.f32.mrb[0].mxu0
        %852 = vmatprep.mubr.f32.mxu0 0.0
        %853 = vmatmul.mubr.f32.gmra.mrb[0].mxu0 %v330
        %v854 = vpop.f32.mrb[0].mxu0
        %v855 = vadd.f32 %v751, %v854
        %v856 = vpop.f32.mrb[0].mxu0
        %857 = vmatprep.mubr.f32.mxu0 0.0
        %858 = vmatmul.mubr.f32.gmra.mrb[0].mxu0 %v333
        %v859 = vpop.f32.mrb[0].mxu0
        %v860 = vadd.f32 %v751, %v859
        %v861 = vpop.f32.mrb[0].mxu0
        %862 = vmatprep.mubr.f32.mxu0 0.0
        %863 = vmatmul.mubr.f32.gmra.mrb[0].mxu0 %v336
        %v864 = vpop.f32.mrb[0].mxu0
        %v865 = vadd.f32 %v751, %v864
        %v866 = vpop.f32.mrb[0].mxu0
        %867 = vmatprep.mubr.f32.mxu0 0.0
        %868 = vmatmul.mubr.f32.gmra.mrb[0].mxu0 %v339
        %v869 = vpop.f32.mrb[0].mxu0
        %v870 = vadd.f32 %v751, %v869
        %v871 = vpop.f32.mrb[0].mxu0
        %872 = vmatprep.mubr.f32.mxu0 0.0
        %873 = vmatmul.mubr.f32.gmra.mrb[0].mxu0 %v342
        %v874 = vpop.f32.mrb[0].mxu0
        %v875 = vadd.f32 %v751, %v874
        %v876 = vpop.f32.mrb[0].mxu0
        %877 = vmatprep.mubr.f32.mxu0 0.0
        %878 = vmatmul.mubr.f32.gmra.mrb[0].mxu0 %v345
        %v879 = vpop.f32.mrb[0].mxu0
        %v880 = vadd.f32 %v751, %v879
        %v881 = vpop.f32.mrb[0].mxu0
        %882 = vmatprep.mubr.f32.mxu0 0.0
        %883 = vmatmul.mubr.f32.gmra.mrb[0].mxu0 %v348
        %v884 = vpop.f32.mrb[0].mxu0
        %v885 = vadd.f32 %v751, %v884
        %v886 = vpop.f32.mrb[0].mxu0
        %887 = vmatprep.mubr.f32.mxu0 0.0
        %888 = vmatmul.mubr.f32.gmra.mrb[0].mxu0 %v351
        %v889 = vpop.f32.mrb[0].mxu0
        %v890 = vadd.f32 %v751, %v889
        %v891 = vpop.f32.mrb[0].mxu0
        %892 = vmatprep.mubr.f32.mxu0 0.0
        %893 = vmatmul.mubr.f32.gmra.mrb[0].mxu0 %v354
        %v894 = vpop.f32.mrb[0].mxu0
        %v895 = vadd.f32 %v751, %v894
        %v896 = vpop.f32.mrb[0].mxu0
        %897 = vdwg.mxu0
        %v898 = vadd.f32 %v726, %v820
        %v899 = vadd.f32 %v727, %v825
        %v900 = vadd.f32 %v728, %v830
        %v901 = vadd.f32 %v729, %v835
        %v902 = vadd.f32 %v730, %v840
        %v903 = vadd.f32 %v731, %v845
        %v904 = vadd.f32 %v732, %v850
        %v905 = vadd.f32 %v733, %v855
        %v906 = vadd.f32 %v734, %v860
        %v907 = vadd.f32 %v735, %v865
        %v908 = vadd.f32 %v736, %v870
        %v909 = vadd.f32 %v737, %v875
        %v910 = vadd.f32 %v738, %v880
        %v911 = vadd.f32 %v739, %v885
        %v912 = vadd.f32 %v740, %v890
        %v913 = vadd.f32 %v741, %v895
        %v914 = vmax.f32 %v898, 0.0
        %v915 = vmax.f32 %v899, 0.0
        %v916 = vmax.f32 %v900, 0.0
        %v917 = vmax.f32 %v901, 0.0
        %v918 = vmax.f32 %v902, 0.0
        %v919 = vmax.f32 %v903, 0.0
        %v920 = vmax.f32 %v904, 0.0
        %v921 = vmax.f32 %v905, 0.0
        %v922 = vmax.f32 %v906, 0.0
        %v923 = vmax.f32 %v907, 0.0
        %v924 = vmax.f32 %v908, 0.0
        %v925 = vmax.f32 %v909, 0.0
        %v926 = vmax.f32 %v910, 0.0
        %v927 = vmax.f32 %v911, 0.0
        %v928 = vmax.f32 %v912, 0.0
        %v929 = vmax.f32 %v913, 0.0
        %930 = vst [vmem:[%s272] sm:$0xff] %v914
        %931 = vst [vmem:[%s272 + $0x8] sm:$0xff] %v915
        %932 = vst [vmem:[%s272 + $0x10] sm:$0xff] %v916
        %933 = vst [vmem:[%s272 + $0x18] sm:$0xff] %v917
        %934 = vst [vmem:[%s272 + $0x20] sm:$0xff] %v918
        %935 = vst [vmem:[%s272 + $0x28] sm:$0xff] %v919
        %936 = vst [vmem:[%s272 + $0x30] sm:$0xff] %v920
        %937 = vst [vmem:[%s272 + $0x38] sm:$0xff] %v921
        %938 = vst [vmem:[%s272 + $0x40] sm:$0xff] %v922
        %939 = vst [vmem:[%s272 + $0x48] sm:$0xff] %v923
        %940 = vst [vmem:[%s272 + $0x50] sm:$0xff] %v924
        %941 = vst [vmem:[%s272 + $0x58] sm:$0xff] %v925
        %942 = vst [vmem:[%s272 + $0x60] sm:$0xff] %v926
        %943 = vst [vmem:[%s272 + $0x68] sm:$0xff] %v927
        %944 = vst [vmem:[%s272 + $0x70] sm:$0xff] %v928
        %945 = vst [vmem:[%s272 + $0x78] sm:$0xff] %v929
        %s946 = sand.u32 %s181, 1
        %s947 = scalar_lea.sflag [#allocation3], %s946
        %s948 = sand.u32 %s181, 1
        %s949 = smul.addr %s948, 128
        %s950 = scalar_lea.vmem [#allocation2], %s949
        // Predicated region
        $region49: #{tpu_custom_call.1} parent=47 // pred_check
          %p951 = pneg %p191
        $region50: #{tpu_custom_call.1} parent=47 // pred_check_branch
          %953 = sbr.rel (%p951) target = $region52
        $region51: #{tpu_custom_call.1} parent=47 // pred_region
          %s954 = smul.u32 16, %s21
          %s956 = ssub.s32 2048, 2048
          %957 = vsyncadd %s947, %s956
          %s958 = smul.addr %s954, 128
          %s959 = scalar_lea.hbm %s7, %s958
          %s960 = sshll.u32 %s950, 4
          %s961 = int_to_ptr.vmem [resolvable:$true] %s960
          %966 = dma.vmem_to_hbm [thread:$0]  %s961, 2048, %s959, %s947, 128, 128, 8
        $region52: #{tpu_custom_call.1} parent=47 // pred_fallthru
          _
      $region48: #{tpu_custom_call.1} parent=5 // pred_fallthru
        _
      %p967 = scmp.le.s32.totalorder 2, %s16
      // Predicated region
      $region53: #{tpu_custom_call.1} parent=5 // pred_check
        %p968 = pneg %p967
      $region54: #{tpu_custom_call.1} parent=5 // pred_check_branch
        %970 = sbr.rel (%p968) target = $region56
      $region55: #{tpu_custom_call.1} parent=5 // pred_region
        %s971 = ssub.s32 %s16, 2
        // Predicated region
        $region57: #{tpu_custom_call.1} parent=55 // pred_check
          %p972 = pneg %p197
        $region58: #{tpu_custom_call.1} parent=55 // pred_check_branch
          %974 = sbr.rel (%p972) target = $region60
        $region59: #{tpu_custom_call.1} parent=55 // pred_region
          %s975 = sand.u32 %s182, 1
          %s976 = scalar_lea.sflag [#allocation3], %s975
          %s977 = sand.u32 %s182, 1
          %s978 = smul.addr %s977, 128
          %s979 = scalar_lea.vmem [#allocation2], %s978
          %980 = dma.done %s976, 2048
        $region60: #{tpu_custom_call.1} parent=55 // pred_fallthru
          _
      $region56: #{tpu_custom_call.1} parent=5 // pred_fallthru
        _
    $region6: #{tpu_custom_call.1} parent=1 // loop_footer
      %s20 = sadd.s32 1, %s16
    $region7: #{tpu_custom_call.1} parent=1 // loop_footer_branch
      %15 = sbr.rel target = $region3
    $region8: #{tpu_custom_call.1} parent=1 // loop_exit
      _
    %981 = vsyncpa [#allocation3], 1
    %s982 = scalar_lea.sflag [#allocation3], 1
    %983 = vsyncpa %s982, 1

</llo_original>
